<compile_context>
chip_gen: v6e
topology: v6e:2x2x1
jax: 0.10.0
libtpu: 0.0.40
codegen_flags: <defaults>
</compile_context>

<pallas_src>
import dataclasses
import functools
from typing import Optional

import jax
import jax.numpy as jnp
from jax.experimental import pallas as pl
from jax.experimental.pallas import tpu as pltpu

_F32_TINY = float(jnp.finfo(jnp.float32).tiny)
_LANE = 128
_SUBLANE = 8


def _round_up(x, m):
    return ((x + m - 1) // m) * m


def _cdiv(a, b):
    return (a + b - 1) // b


def _vmem_cap_bytes():
    """Generation-aware scoped-VMEM cap with headroom for Mosaic scratch."""
    phys = 64 << 20
    try:
        phys = int(getattr(pltpu.get_tpu_info(), "vmem_capacity_bytes", phys))
    except Exception:
        pass
    # v7x: 64 MiB physical -> ~48 MiB usable.  v5e/v6e: 128 MiB -> ~112 MiB.
    return max(32 << 20, min(phys - (16 << 20), 112 << 20))


@dataclasses.dataclass(frozen=True)
class PreparedMemory:
    """Padded (and possibly norm-augmented) memory state, reusable across calls."""
    mem: jax.Array                 # (B, k_pad, v_pad)
    norm: Optional[jax.Array]      # (B, k_pad, 128) when V % 128 == 0, else None
    key_dim: int                   # K
    value_dim: int                 # V


def prepare_memory(memory, normalization, *, use_bf16_matmul=False):
    """Hoistable out of the hot path: build the padded memory block once."""
    B, K, V = memory.shape
    assert normalization.shape == (B, K)
    dtype = jnp.bfloat16 if use_bf16_matmul else jnp.float32
    k_pad = _round_up(K, _LANE)
    v_pad = _round_up(V, _LANE)
    separate_norm = (V % _LANE == 0)

    mem = jnp.zeros((B, k_pad, v_pad), dtype=jnp.float32)
    mem = mem.at[:, :K, :V].set(memory.astype(jnp.float32))
    norm = None
    if separate_norm:
        # V already lane-aligned: keep the memory block tight; the norm vector
        # gets its own 128-wide block (column 0 valid, rest zero).
        norm = jnp.zeros((B, k_pad, _LANE), dtype=jnp.float32)
        norm = norm.at[:, :K, 0].set(normalization.astype(jnp.float32))
        norm = norm.astype(dtype)
    else:
        # Norm rides for free in the existing lane padding (column V).
        mem = mem.at[:, :K, V].set(normalization.astype(jnp.float32))
    return PreparedMemory(mem=mem.astype(dtype), norm=norm, key_dim=K, value_dim=V)


def _memory_retrieval_kernel(*refs, v_col, separate_norm, k_tiled):
    if k_tiled:
        if separate_norm:
            q_ref, mem_ref, nrm_ref, out_ref, acc_ref, nacc_ref = refs
        else:
            q_ref, mem_ref, out_ref, acc_ref = refs
            nrm_ref = nacc_ref = None
    else:
        if separate_norm:
            q_ref, mem_ref, nrm_ref, out_ref = refs
        else:
            q_ref, mem_ref, out_ref = refs
            nrm_ref = None

    # Activation stand-in (ReLU) on the VPU.  On the bf16 fast path the wrapper
    # already shipped Q in bf16 (ReLU commutes exactly with the downcast).
    aq = jnp.maximum(q_ref[...], 0.0).astype(mem_ref.dtype)

    if not k_tiled:
        # One MXU matmul yields the retrieved values; the norm dot either comes
        # out of the same matmul (embedded column) or a tiny 128-wide matmul.
        res = jnp.dot(aq, mem_ref[...], preferred_element_type=jnp.float32)
        if separate_norm:
            nres = jnp.dot(aq, nrm_ref[...], preferred_element_type=jnp.float32)
            norm = nres[:, 0:1]
        else:
            norm = res[:, v_col:v_col + 1]
        fixed = jnp.maximum(norm, _F32_TINY)
        # retrieved / (1 / max(norm, tiny))  ==  retrieved * max(norm, tiny)
        out_ref[...] = (res * fixed).astype(out_ref.dtype)
        return

    # K-tiled path: f32 accumulators, K is the innermost ("arbitrary") axis.
    k = pl.program_id(2)

    @pl.when(k == 0)
    def _init():
        acc_ref[...] = jnp.zeros_like(acc_ref)
        if separate_norm:
            nacc_ref[...] = jnp.zeros_like(nacc_ref)

    acc_ref[...] += jnp.dot(aq, mem_ref[...], preferred_element_type=jnp.float32)
    if separate_norm:
        nacc_ref[...] += jnp.dot(aq, nrm_ref[...], preferred_element_type=jnp.float32)

    @pl.when(k == pl.num_programs(2) - 1)
    def _finalize():
        if separate_norm:
            norm = nacc_ref[:, 0:1]
        else:
            norm = acc_ref[:, v_col:v_col + 1]
        fixed = jnp.maximum(norm, _F32_TINY)
        out_ref[...] = (acc_ref[...] * fixed).astype(out_ref.dtype)


def memory_retrieval(queries, memory=None, normalization=None, *,
                     prepared: Optional[PreparedMemory] = None,
                     block_s=2048, k_block=None, use_bf16_matmul=False):
    """queries (B,S,K), memory (B,K,V), normalization (B,K) -> (B,S,V)."""
    if prepared is None:
        prepared = prepare_memory(memory, normalization,
                                  use_bf16_matmul=use_bf16_matmul)
    B, S, K = queries.shape
    Bp, k_pad, v_pad = prepared.mem.shape
    assert B == Bp and K == prepared.key_dim
    V = prepared.value_dim
    separate_norm = prepared.norm is not None

    mdtype = prepared.mem.dtype
    mbytes = jnp.dtype(mdtype).itemsize
    qbytes = mbytes                       # queries shipped in the matmul dtype
    cap = _vmem_cap_bytes()
    norm_cols = _LANE if separate_norm else 0

    # ---- K (contraction) tiling: only when one memory block would hog VMEM.
    mem_block_bytes = k_pad * v_pad * mbytes
    k_budget = min(12 << 20, cap // 4)
    if k_block is not None:
        tk = max(_LANE, min(k_pad, _round_up(k_block, _LANE)))
    elif mem_block_bytes > k_budget:
        tk = max(_LANE, (k_budget // (v_pad * mbytes)) // _LANE * _LANE)
    else:
        tk = k_pad
    while k_pad % tk:                     # tk must evenly divide k_pad
        tk -= _LANE
    n_k = k_pad // tk
    k_tiled = n_k > 1

    # ---- S tiling: as big as the VMEM budget allows (amortize ~0.35us per
    # grid step), then evenly split so ragged S pays no fat padded tail.
    mem_resident_est = 2 * tk * (v_pad + norm_cols) * mbytes
    per_row = (2 * tk * qbytes + 2 * v_pad * 4
               + ((v_pad + norm_cols) * 4 if k_tiled else 0))
    s_budget = max(min(cap // 4, cap - mem_resident_est - (4 << 20)), 1 << 20)
    S8 = _round_up(S, _SUBLANE)
    ts = max(_SUBLANE,
             min(block_s, S8, (s_budget // per_row) // _SUBLANE * _SUBLANE))
    n_s = _cdiv(S8, ts)
    if B * n_s < 2 and S8 >= 2 * _SUBLANE:
        n_s = 2                           # keep both v7x TensorCores busy
    ts = _round_up(_cdiv(S8, n_s), _SUBLANE)
    n_s = _cdiv(S8, ts)
    s_pad = n_s * ts

    # ---- Queries: cast (ReLU commutes with bf16 downcast) and pad lane-dense.
    q = queries.astype(mdtype)
    if (s_pad, k_pad) != (S, K):
        q = jnp.pad(q, ((0, 0), (0, s_pad - S), (0, k_pad - K)))

    # ---- Grid / specs.
    if not k_tiled:
        grid = (B, n_s)
        dims = ("parallel", "parallel")
        # Memory/norm blocks are revisited across the whole S sweep; single-
        # buffer them so the largest VMEM resident is not doubled.
        mem_kwargs = dict(pipeline_mode=pl.Buffered(1)) if n_s > 1 else {}
        in_specs = [
            pl.BlockSpec((pl.Squeezed(), ts, k_pad), lambda b, s: (b, s, 0)),
            pl.BlockSpec((pl.Squeezed(), k_pad, v_pad), lambda b, s: (b, 0, 0),
                         **mem_kwargs),
        ]
        if separate_norm:
            in_specs.append(
                pl.BlockSpec((pl.Squeezed(), k_pad, _LANE),
                             lambda b, s: (b, 0, 0), **mem_kwargs))
        out_spec = pl.BlockSpec((pl.Squeezed(), ts, v_pad), lambda b, s: (b, s, 0))
        scratch = ()
    else:
        grid = (B, n_s, n_k)
        dims = ("parallel", "parallel", "arbitrary")
        in_specs = [
            pl.BlockSpec((pl.Squeezed(), ts, tk), lambda b, s, k: (b, s, k)),
            pl.BlockSpec((pl.Squeezed(), tk, v_pad), lambda b, s, k: (b, k, 0)),
        ]
        if separate_norm:
            in_specs.append(
                pl.BlockSpec((pl.Squeezed(), tk, _LANE),
                             lambda b, s, k: (b, k, 0)))
        out_spec = pl.BlockSpec((pl.Squeezed(), ts, v_pad),
                                lambda b, s, k: (b, s, 0))
        scratch = [pltpu.VMEM((ts, v_pad), jnp.float32)]
        if separate_norm:
            scratch.append(pltpu.VMEM((ts, _LANE), jnp.float32))
        scratch = tuple(scratch)

    mem_bufs = 2 if (k_tiled or n_s == 1) else 1
    per_step = (2 * ts * tk * qbytes
                + mem_bufs * tk * (v_pad + norm_cols) * mbytes
                + 2 * ts * v_pad * 4
                + (ts * (v_pad + norm_cols) * 4 if k_tiled else 0))
    vmem_limit = int(min(cap, max(16 << 20, per_step + (4 << 20))))

    mem_reads = n_s if k_tiled else 1     # block stays VMEM-resident across S
    cost = pl.CostEstimate(
        flops=2 * B * s_pad * k_pad * (v_pad + norm_cols),
        transcendentals=0,
        bytes_accessed=(B * s_pad * k_pad * qbytes
                        + B * mem_reads * k_pad * (v_pad + norm_cols) * mbytes
                        + B * s_pad * v_pad * 4),
    )

    args = (q, prepared.mem) + ((prepared.norm,) if separate_norm else ())

    out = pl.pallas_call(
        functools.partial(_memory_retrieval_kernel, v_col=V,
                          separate_norm=separate_norm, k_tiled=k_tiled),
        out_shape=jax.ShapeDtypeStruct((B, s_pad, v_pad), jnp.float32),
        grid_spec=pltpu.PrefetchScalarGridSpec(
            num_scalar_prefetch=0,
            grid=grid,
            in_specs=in_specs,
            out_specs=out_spec,
            scratch_shapes=scratch,
        ),
        compiler_params=pltpu.CompilerParams(
            dimension_semantics=dims,
            vmem_limit_bytes=vmem_limit,
        ),
        cost_estimate=cost,
    )(*args)

    return out[:, :S, :V]


def _reference(queries, memory, normalization):
    aq = jnp.maximum(queries, 0.0)
    norm = jnp.einsum("bsk,bk->bs", aq, normalization)
    retrieved = jnp.einsum("bsk,bkv->bsv", aq, memory)
    inverted = 1.0 / jnp.maximum(norm, jnp.finfo(jnp.float32).tiny)
    return retrieved / inverted[:, :, None]


if __name__ == "__main__":
    key = jax.random.PRNGKey(0)

    def make(bkey, B, S, K, V):
        kq, km, kn = jax.random.split(bkey, 3)
        q = jax.random.normal(kq, (B, S, K), dtype=jnp.float32)
        m = jax.random.normal(km, (B, K, V), dtype=jnp.float32)
        n = jax.nn.softplus(jax.random.normal(kn, (B, K), dtype=jnp.float32))
        return q, m, n

    keys = jax.random.split(key, 5)

    # 1) Canonical small shapes (norm embedded in lane padding, single K block).
    q, m, n = make(keys[0], 2, 8, 32, 32)
    out = jax.block_until_ready(memory_retrieval(q, m, n))
    ref = _reference(q, m, n)
    assert out.shape == (2, 8, 32)
    assert bool(jnp.allclose(out, ref, atol=1e-4, rtol=1e-4))

    # 2) Ragged shapes exercising every padding / even-split tiling path.
    q2, m2, n2 = make(keys[1], 2, 12, 48, 40)
    out2 = jax.block_until_ready(memory_retrieval(q2, m2, n2))
    assert out2.shape == (2, 12, 40)
    assert bool(jnp.allclose(out2, _reference(q2, m2, n2), atol=1e-4, rtol=1e-4))

    # 3) Lane-aligned V -> tight memory block + separate norm block; hoisted
    #    prepare_memory() path; B=1 forces a 2-way S split (megacore balance)
    #    and exercises the single-buffered (Buffered(1)) memory block.
    q3, m3, n3 = make(keys[2], 1, 64, 32, 128)
    prepared3 = prepare_memory(m3, n3)
    out3 = jax.block_until_ready(memory_retrieval(q3, prepared=prepared3))
    assert out3.shape == (1, 64, 128)
    assert bool(jnp.allclose(out3, _reference(q3, m3, n3), atol=1e-4, rtol=1e-4))

    # 4) Forced K tiling (reduction grid axis + f32 accumulator), embedded norm.
    q4, m4, n4 = make(keys[3], 2, 16, 256, 96)
    out4 = jax.block_until_ready(memory_retrieval(q4, m4, n4, k_block=128))
    assert out4.shape == (2, 16, 96)
    assert bool(jnp.allclose(out4, _reference(q4, m4, n4), atol=1e-3, rtol=1e-3))

    # 5) Forced K tiling with a separate norm block (V lane-aligned).
    q5, m5, n5 = make(keys[4], 2, 16, 256, 128)
    out5 = jax.block_until_ready(memory_retrieval(q5, m5, n5, k_block=128))
    assert out5.shape == (2, 16, 128)
    assert bool(jnp.allclose(out5, _reference(q5, m5, n5), atol=1e-3, rtol=1e-3))

    # 6) bf16 MXU fast path (queries shipped in bf16; f32 accumulation).
    out6 = jax.block_until_ready(memory_retrieval(q, m, n, use_bf16_matmul=True))
    rel_err = jnp.max(jnp.abs(out6 - ref)) / (jnp.max(jnp.abs(ref)) + 1e-6)
    assert float(rel_err) < 0.05

    print("KERNEL_OK")
</pallas_src>

<mosaic_0001>
module attributes {stable_mosaic.version = 11 : i64} {
  func.func @_memory_retrieval_kernel(%arg0: i32, %arg1: i32, %arg2: memref<1x8x128xf32, #tpu.memory_space<vmem>>, %arg3: memref<1x128x128xf32, #tpu.memory_space<vmem>>, %arg4: memref<1x8x128xf32, #tpu.memory_space<vmem>>) attributes {dimension_semantics = [#tpu.dimension_semantics<parallel>, #tpu.dimension_semantics<parallel>], iteration_bounds = array<i64: 2, 1>, scalar_prefetch = 0 : i64, scratch_operands = 0 : i64, tpu.core_type = #tpu.core_type<tc>, window_params = [{transform_indices = @transform_0, window_bounds = array<i64: 1, 8, 128>}, {transform_indices = @transform_1, window_bounds = array<i64: 1, 128, 128>}, {transform_indices = @transform_2, window_bounds = array<i64: 1, 8, 128>}]} {
    %c0 = arith.constant 0 : index
    %c0_0 = arith.constant 0 : index
    %c0_1 = arith.constant 0 : index
    %0 = vector.load %arg2[%c0, %c0_0, %c0_1] : memref<1x8x128xf32, #tpu.memory_space<vmem>>, vector<1x8x128xf32>
    %1 = vector.shape_cast %0 : vector<1x8x128xf32> to vector<8x128xf32>
    %cst = arith.constant 0.000000e+00 : f32
    %2 = vector.broadcast %cst : f32 to vector<8x128xf32>
    %3 = arith.maximumf %1, %2 : vector<8x128xf32>
    %c0_2 = arith.constant 0 : index
    %c0_3 = arith.constant 0 : index
    %c0_4 = arith.constant 0 : index
    %4 = vector.load %arg3[%c0_2, %c0_3, %c0_4] : memref<1x128x128xf32, #tpu.memory_space<vmem>>, vector<1x128x128xf32>
    %5 = vector.shape_cast %4 : vector<1x128x128xf32> to vector<128x128xf32>
    %cst_5 = arith.constant dense<0.000000e+00> : vector<8x128xf32>
    %6 = tpu.matmul %3, %5, %cst_5 {dimension_numbers = #tpu.dot_dimension_numbers<[1], [0], [0], [1], [0, 0, 1, 1], [], []>} : vector<8x128xf32>, vector<128x128xf32>, vector<8x128xf32> -> vector<8x128xf32>
    %7 = vector.extract_strided_slice %6 {offsets = [0, 32], sizes = [8, 1], strides = [1, 1]} : vector<8x128xf32> to vector<8x1xf32>
    %cst_6 = arith.constant 1.17549435E-38 : f32
    %8 = vector.broadcast %cst_6 : f32 to vector<8x1xf32>
    %9 = arith.maximumf %7, %8 : vector<8x1xf32>
    %10 = vector.broadcast %9 : vector<8x1xf32> to vector<8x128xf32>
    %11 = arith.mulf %6, %10 : vector<8x128xf32>
    %c0_7 = arith.constant 0 : index
    %c0_8 = arith.constant 0 : index
    %c0_9 = arith.constant 0 : index
    %12 = vector.load %arg4[%c0_7, %c0_8, %c0_9] : memref<1x8x128xf32, #tpu.memory_space<vmem>>, vector<1x8x128xf32>
    %13 = vector.shape_cast %12 : vector<1x8x128xf32> to vector<8x128xf32>
    %14 = vector.shape_cast %11 : vector<8x128xf32> to vector<1x8x128xf32>
    tpu.vector_store %arg4[%c0_7, %c0_8, %c0_9], %14 {strides = array<i32>} : memref<1x8x128xf32, #tpu.memory_space<vmem>>, vector<1x8x128xf32>,
    return
  }
  func.func @transform_0(%arg0: i32, %arg1: i32) -> (i32, i32, i32) {
    %c0_i32 = arith.constant 0 : i32
    %c0_i32_0 = arith.constant 0 : i32
    return %arg0, %arg1, %c0_i32 : i32, i32, i32
  }
  func.func @transform_1(%arg0: i32, %arg1: i32) -> (i32, i32, i32) {
    %c0_i32 = arith.constant 0 : i32
    %c0_i32_0 = arith.constant 0 : i32
    %c0_i32_1 = arith.constant 0 : i32
    return %arg0, %c0_i32, %c0_i32_0 : i32, i32, i32
  }
  func.func @transform_2(%arg0: i32, %arg1: i32) -> (i32, i32, i32) {
    %c0_i32 = arith.constant 0 : i32
    %c0_i32_0 = arith.constant 0 : i32
    return %arg0, %arg1, %c0_i32 : i32, i32, i32
  }
}

</mosaic_0001>

<llo_original>
// kernel: tpu_custom_call.1
$region0: #{tpu_custom_call.1}
  #allocation0 [shape = 'u32[]', space=smem, size = 0x4, offset = 0x4, fixed_abs, tag = 'smem constant byte address 0x4 - core index']
  #allocation1 [shape = 'u32[144,128]{1,0:T(1,128)}', space=vmem, size = 0x12000, scoped, tag = 'internal scratch']
  %s0 = inlined_call_operand.hbm [shape: f32[2,8,128], index: 0, kind: input, shape index: {}]
  %s1 = inlined_call_operand.hbm [shape: f32[2,128,128], index: 1, kind: input, shape index: {}]
  %s2 = inlined_call_operand.hbm [shape: f32[2,8,128], index: 2, kind: output, shape index: {}]
  %s3 = sld [smem:[#allocation0]]
  $region49: #{tpu_custom_call.1} parent=0
    _
  %s5 = ssub.s32 1, %s3
  %s6 = scalar_select 0, %s5, %s3
  $region1: #{tpu_custom_call.1} parent=0
    #allocation2 [shape = 'u8[8192]{0}', space=vmem, size = 0x2000, scoped, tag = 'input window, operand 0']
    #allocation3 [shape = 's32[2]{0}', space=sflag, size = 0x8, scoped, tag = 'scoped memory for tpu_custom_call.1']
    #allocation4 [shape = 's32[2]{0}', space=sflag, size = 0x8, scoped, tag = 'scoped memory for tpu_custom_call.1']
    #allocation5 [shape = 'u8[131072]{0}', space=vmem, size = 0x20000, scoped, tag = 'input window, operand 1']
    #allocation6 [shape = 's32[2]{0}', space=sflag, size = 0x8, scoped, tag = 'scoped memory for tpu_custom_call.1']
    #allocation7 [shape = 'u8[8192]{0}', space=vmem, size = 0x2000, scoped, tag = 'output window, operand 0']
    %7 = vsyncpa [#allocation3], 0
    %s8 = scalar_lea.sflag [#allocation3], 1
    %9 = vsyncpa %s8, 0
    %10 = vsyncpa [#allocation6], 0
    %s11 = scalar_lea.sflag [#allocation6], 1
    %12 = vsyncpa %s11, 0
    %13 = vsyncpa [#allocation4], 0
    %s14 = scalar_lea.sflag [#allocation4], 1
    %15 = vsyncpa %s14, 0
    loop: start=0, step=1, limit=4
    $region2: #{tpu_custom_call.1} parent=1 // loop_pre_header
      _
    $region3: #{tpu_custom_call.1} parent=1 // loop_header
      %s17 = sphi 0, %s21
      %p18 = scmp.ge.s32.totalorder %s17, 4
      %s24 = sphi 0, %s36
      %s25 = sphi 0, %s32
      %s26 = sphi 0, %s24
      %s27 = sphi 0, %s25
      %s28 = sphi 0, %s26
      %s29 = sphi 0, %s27
      %s41 = sphi 0, %s43
      %s44 = sphi 0, %s41
      %s45 = sphi 0, %s44
      %s61 = sphi 0, %s45
      %s67 = sphi 0, %s69
      %s70 = sphi 0, %s67
      %s71 = sphi 0, %s70
      %s87 = sphi 0, %s71
      %s95 = sphi 0, %s97
      %s98 = sphi 0, %s95
      %s99 = sphi 0, %s98
      %s115 = sphi 0, %s99
    $region4: #{tpu_custom_call.1} parent=1 // loop_header_branch
      %20 = sbr.rel (%p18) target = $region8
    $region5: #{tpu_custom_call.1} parent=1 // loop_body
      %s22 = ssub.s32 %s17, 1
      %s23 = ssub.s32 %s17, 2
      %s30 = sadd.s32 1, %s25
      %p31 = scmp.ge.s32.totalorder %s30, 1
      %s32 = scalar_select %p31, 0, %s30
      %s33 = sadd.s32 1, %s24
      %s34 = scalar_select %p31, %s33, %s24
      %p35 = scmp.ge.s32.totalorder %s34, 2
      %s36 = scalar_select %p35, 0, %s34
      %s37 = ssub.s32 %s24, %s36
      %s38 = ssub.s32 %s25, %s32
      %s39 = sor.u32 %s37, %s38
      %p40 = scmp.eq.s32.totalorder %s39, 0
      %s42 = sadd.s32 %s41, 1
      %s43 = scalar_select %p40, %s41, %s42
      %p46 = pneg %p40
      %p47 = scmp.eq.s32.totalorder %s17, 1
      %p48 = por %p46, %p47
      %p49 = scmp.ne.s32.totalorder %s41, %s44
      %p50 = scmp.eq.s32.totalorder %s17, 0
      %p51 = por %p49, %p50
      %p52 = scmp.ne.s32.totalorder %s41, %s44
      %p53 = scmp.eq.s32.totalorder %s22, 1
      %p54 = por %p52, %p53
      %p55 = scmp.ne.s32.totalorder %s44, %s45
      %p56 = scmp.eq.s32.totalorder %s22, 0
      %p57 = por %p55, %p56
      %p58 = scmp.ne.s32.totalorder %s44, %s45
      %p59 = scmp.eq.s32.totalorder %s23, 1
      %p60 = por %p58, %p59
      %p62 = scmp.ne.s32.totalorder %s45, %s61
      %p63 = scmp.eq.s32.totalorder %s23, 0
      %p64 = por %p62, %p63
      %s65 = ssub.s32 %s24, %s36
      %p66 = scmp.eq.s32.totalorder %s65, 0
      %s68 = sadd.s32 %s67, 1
      %s69 = scalar_select %p66, %s67, %s68
      %p72 = pneg %p66
      %p73 = scmp.eq.s32.totalorder %s17, 1
      %p74 = por %p72, %p73
      %p75 = scmp.ne.s32.totalorder %s67, %s70
      %p76 = scmp.eq.s32.totalorder %s17, 0
      %p77 = por %p75, %p76
      %p78 = scmp.ne.s32.totalorder %s67, %s70
      %p79 = scmp.eq.s32.totalorder %s22, 1
      %p80 = por %p78, %p79
      %p81 = scmp.ne.s32.totalorder %s70, %s71
      %p82 = scmp.eq.s32.totalorder %s22, 0
      %p83 = por %p81, %p82
      %p84 = scmp.ne.s32.totalorder %s70, %s71
      %p85 = scmp.eq.s32.totalorder %s23, 1
      %p86 = por %p84, %p85
      %p88 = scmp.ne.s32.totalorder %s71, %s87
      %p89 = scmp.eq.s32.totalorder %s23, 0
      %p90 = por %p88, %p89
      %s91 = ssub.s32 %s24, %s36
      %s92 = ssub.s32 %s25, %s32
      %s93 = sor.u32 %s91, %s92
      %p94 = scmp.eq.s32.totalorder %s93, 0
      %s96 = sadd.s32 %s95, 1
      %s97 = scalar_select %p94, %s95, %s96
      %p100 = pneg %p94
      %p101 = scmp.eq.s32.totalorder %s17, 1
      %p102 = por %p100, %p101
      %p103 = scmp.ne.s32.totalorder %s95, %s98
      %p104 = scmp.eq.s32.totalorder %s17, 0
      %p105 = por %p103, %p104
      %p106 = scmp.ne.s32.totalorder %s95, %s98
      %p107 = scmp.eq.s32.totalorder %s22, 1
      %p108 = por %p106, %p107
      %p109 = scmp.ne.s32.totalorder %s98, %s99
      %p110 = scmp.eq.s32.totalorder %s22, 0
      %p111 = por %p109, %p110
      %p112 = scmp.ne.s32.totalorder %s98, %s99
      %p113 = scmp.eq.s32.totalorder %s23, 1
      %p114 = por %p112, %p113
      %p116 = scmp.ne.s32.totalorder %s99, %s115
      %p117 = scmp.eq.s32.totalorder %s23, 0
      %p118 = por %p116, %p117
      %p119 = scmp.le.s32.totalorder 1, %s17
      %p120 = scmp.lt.s32.totalorder %s17, 3
      %p121 = pnand %p119, %p120
      %p122 = pneg %p121
      // Predicated region
      $region9: #{tpu_custom_call.1} parent=5 // pred_check
        _
      $region10: #{tpu_custom_call.1} parent=5 // pred_check_branch
        %124 = sbr.rel (%p121) target = $region12
      $region11: #{tpu_custom_call.1} parent=5 // pred_region
        %s125 = ssub.s32 %s17, 1
      $region12: #{tpu_custom_call.1} parent=5 // pred_fallthru
        _
      %p126 = scmp.lt.s32.totalorder %s17, 2
      // Predicated region
      $region13: #{tpu_custom_call.1} parent=5 // pred_check
        %p127 = pneg %p126
      $region14: #{tpu_custom_call.1} parent=5 // pred_check_branch
        %129 = sbr.rel (%p127) target = $region16
      $region15: #{tpu_custom_call.1} parent=5 // pred_region
        // Predicated region
        $region17: #{tpu_custom_call.1} parent=15 // pred_check
          %p130 = pneg %p51
        $region18: #{tpu_custom_call.1} parent=15 // pred_check_branch
          %132 = sbr.rel (%p130) target = $region20
        $region19: #{tpu_custom_call.1} parent=15 // pred_region
          %s133 = sand.u32 %s41, 1
          %s134 = scalar_lea.sflag [#allocation3], %s133
          %s135 = sand.u32 %s41, 1
          %s136 = smul.addr %s135, 8
          %s137 = scalar_lea.vmem [#allocation2], %s136
          %s139 = ssub.s32 128, 128
          %140 = vsyncadd %s134, %s139
          %s141 = sadd.s32 %s25, %s24
          %s142 = smul.addr %s141, 128
          %s143 = scalar_lea.hbm %s0, %s142
          %s145 = sshll.u32 %s137, 4
          %s146 = int_to_ptr.vmem [resolvable:$true] %s145
          %148 = dma.hbm_to_vmem [thread:$0]  %s143, 128, %s146, %s134
        $region20: #{tpu_custom_call.1} parent=15 // pred_fallthru
          _
        // Predicated region
        $region21: #{tpu_custom_call.1} parent=15 // pred_check
          %p149 = pneg %p77
        $region22: #{tpu_custom_call.1} parent=15 // pred_check_branch
          %151 = sbr.rel (%p149) target = $region24
        $region23: #{tpu_custom_call.1} parent=15 // pred_region
          %s152 = sand.u32 %s67, 1
          %s153 = scalar_lea.sflag [#allocation6], %s152
          %s154 = sand.u32 %s67, 1
          %s155 = smul.addr %s154, 128
          %s156 = scalar_lea.vmem [#allocation5], %s155
          %s158 = ssub.s32 2048, 2048
          %159 = vsyncadd %s153, %s158
          %s160 = smul.addr %s24, 16
          %s161 = smul.addr %s160, 128
          %s162 = scalar_lea.hbm %s1, %s161
          %s163 = sshll.u32 %s156, 4
          %s164 = int_to_ptr.vmem [resolvable:$true] %s163
          %169 = dma.hbm_to_vmem [thread:$0]  %s162, 2048, %s164, %s153, 128, 128, 8
        $region24: #{tpu_custom_call.1} parent=15 // pred_fallthru
          _
      $region16: #{tpu_custom_call.1} parent=5 // pred_fallthru
        _
      %p170 = scmp.le.s32.totalorder 1, %s17
      %p171 = scmp.lt.s32.totalorder %s17, 3
      %p172 = pnand %p170, %p171
      %p173 = pneg %p172
      // Predicated region
      $region25: #{tpu_custom_call.1} parent=5 // pred_check
        _
      $region26: #{tpu_custom_call.1} parent=5 // pred_check_branch
        %175 = sbr.rel (%p172) target = $region28
      $region27: #{tpu_custom_call.1} parent=5 // pred_region
        %s176 = ssub.s32 %s17, 1
        %s177 = sand.u32 %s44, 1
        %s178 = scalar_lea.sflag [#allocation3], %s177
        %s179 = sand.u32 %s44, 1
        %s180 = smul.addr %s179, 8
        %s181 = scalar_lea.vmem [#allocation2], %s180
        // Predicated region
        $region29: #{tpu_custom_call.1} parent=27 // pred_check
          %p182 = pneg %p57
        $region30: #{tpu_custom_call.1} parent=27 // pred_check_branch
          %184 = sbr.rel (%p182) target = $region32
        $region31: #{tpu_custom_call.1} parent=27 // pred_region
          %185 = dma.done %s178, 128
        $region32: #{tpu_custom_call.1} parent=27 // pred_fallthru
          _
        %s186 = sand.u32 %s70, 1
        %s187 = scalar_lea.sflag [#allocation6], %s186
        %s188 = sand.u32 %s70, 1
        %s189 = smul.addr %s188, 128
        %s190 = scalar_lea.vmem [#allocation5], %s189
        // Predicated region
        $region33: #{tpu_custom_call.1} parent=27 // pred_check
          %p191 = pneg %p83
        $region34: #{tpu_custom_call.1} parent=27 // pred_check_branch
          %193 = sbr.rel (%p191) target = $region36
        $region35: #{tpu_custom_call.1} parent=27 // pred_region
          %194 = dma.done %s187, 2048
        $region36: #{tpu_custom_call.1} parent=27 // pred_fallthru
          _
        %s195 = sand.u32 %s44, 1
        %s196 = scalar_lea.sflag [#allocation3], %s195
        %s197 = sand.u32 %s44, 1
        %s198 = smul.addr %s197, 8
        %s199 = scalar_lea.vmem [#allocation2], %s198
        %p200 = pneg %p57
        %p201 = pneg %p54
        %s202 = sand.u32 %s70, 1
        %s203 = scalar_lea.sflag [#allocation6], %s202
        %s204 = sand.u32 %s70, 1
        %s205 = smul.addr %s204, 128
        %s206 = scalar_lea.vmem [#allocation5], %s205
        %p207 = pneg %p83
        %p208 = pneg %p80
        %p209 = pneg %p111
        %p210 = pneg %p108
        %s211 = sand.u32 %s98, 1
        %s212 = scalar_lea.sflag [#allocation4], %s211
        %s213 = sand.u32 %s98, 1
        %s214 = smul.addr %s213, 8
        %s215 = scalar_lea.vmem [#allocation7], %s214
        %v216 = vld [vmem:[%s181] sm:$0xff]
        %v217 = vmax.f32 %v216, 0.0
        %v218 = vld [vmem:[%s190] sm:$0xff]
        %v219 = vld [vmem:[%s190 + $0x8] sm:$0xff]
        %v220 = vld [vmem:[%s190 + $0x10] sm:$0xff]
        %v221 = vld [vmem:[%s190 + $0x18] sm:$0xff]
        %v222 = vld [vmem:[%s190 + $0x20] sm:$0xff]
        %v223 = vld [vmem:[%s190 + $0x28] sm:$0xff]
        %v224 = vld [vmem:[%s190 + $0x30] sm:$0xff]
        %v225 = vld [vmem:[%s190 + $0x38] sm:$0xff]
        %v226 = vld [vmem:[%s190 + $0x40] sm:$0xff]
        %v227 = vld [vmem:[%s190 + $0x48] sm:$0xff]
        %v228 = vld [vmem:[%s190 + $0x50] sm:$0xff]
        %v229 = vld [vmem:[%s190 + $0x58] sm:$0xff]
        %v230 = vld [vmem:[%s190 + $0x60] sm:$0xff]
        %v231 = vld [vmem:[%s190 + $0x68] sm:$0xff]
        %v232 = vld [vmem:[%s190 + $0x70] sm:$0xff]
        %v233 = vld [vmem:[%s190 + $0x78] sm:$0xff]
        %234 = vmatprep.subr.mxu0 0.0
        %235 = vmatpush1.msra.mxu0 %v233
        %236 = vmatprep.subr.mxu0 0.0
        %237 = vmatpush1.msra.mxu0 %v232
        %238 = vmatprep.subr.mxu0 0.0
        %239 = vmatpush1.msra.mxu0 %v231
        %240 = vmatprep.subr.mxu0 0.0
        %241 = vmatpush1.msra.mxu0 %v230
        %242 = vmatprep.subr.mxu0 0.0
        %243 = vmatpush1.msra.mxu0 %v229
        %244 = vmatprep.subr.mxu0 0.0
        %245 = vmatpush1.msra.mxu0 %v228
        %246 = vmatprep.subr.mxu0 0.0
        %247 = vmatpush1.msra.mxu0 %v227
        %248 = vmatprep.subr.mxu0 0.0
        %249 = vmatpush1.msra.mxu0 %v226
        %250 = vmatprep.subr.mxu0 0.0
        %251 = vmatpush1.msra.mxu0 %v225
        %252 = vmatprep.subr.mxu0 0.0
        %253 = vmatpush1.msra.mxu0 %v224
        %254 = vmatprep.subr.mxu0 0.0
        %255 = vmatpush1.msra.mxu0 %v223
        %256 = vmatprep.subr.mxu0 0.0
        %257 = vmatpush1.msra.mxu0 %v222
        %258 = vmatprep.subr.mxu0 0.0
        %259 = vmatpush1.msra.mxu0 %v221
        %260 = vmatprep.subr.mxu0 0.0
        %261 = vmatpush1.msra.mxu0 %v220
        %262 = vmatprep.subr.mxu0 0.0
        %263 = vmatpush1.msra.mxu0 %v219
        %264 = vmatprep.subr.mxu0 0.0
        %265 = vmatpush1.msra.mxu0 %v218
        %266 = vmatprep.subr.mxu0 0.0
        %267 = vmatpush2.msra.mxu0 0.0
        %268 = vmatprep.subr.mxu0 0.0
        %269 = vmatpush2.msra.mxu0 0.0
        %270 = vmatprep.subr.mxu0 0.0
        %271 = vmatpush2.msra.mxu0 0.0
        %272 = vmatprep.subr.mxu0 0.0
        %273 = vmatpush2.msra.mxu0 0.0
        %274 = vmatprep.subr.mxu0 0.0
        %275 = vmatpush2.msra.mxu0 0.0
        %276 = vmatprep.subr.mxu0 0.0
        %277 = vmatpush2.msra.mxu0 0.0
        %278 = vmatprep.subr.mxu0 0.0
        %279 = vmatpush2.msra.mxu0 0.0
        %280 = vmatprep.subr.mxu0 0.0
        %281 = vmatpush2.msra.mxu0 0.0
        %282 = vmatprep.subr.mxu0 0.0
        %283 = vmatpush2.msra.mxu0 0.0
        %284 = vmatprep.subr.mxu0 0.0
        %285 = vmatpush2.msra.mxu0 0.0
        %286 = vmatprep.subr.mxu0 0.0
        %287 = vmatpush2.msra.mxu0 0.0
        %288 = vmatprep.subr.mxu0 0.0
        %289 = vmatpush2.msra.mxu0 0.0
        %290 = vmatprep.subr.mxu0 0.0
        %291 = vmatpush2.msra.mxu0 0.0
        %292 = vmatprep.subr.mxu0 0.0
        %293 = vmatpush2.msra.mxu0 0.0
        %294 = vmatprep.subr.mxu0 0.0
        %295 = vmatpush2.msra.mxu0 0.0
        %296 = vmatprep.subr.mxu0 0.0
        %297 = vmatpush2.msra.mxu0 0.0
        %298 = vmatprep.mubr.f32.mxu0 0.0
        %299 = vmatmul.mubr.f32.gmra.mxu0 %v217
        %v300 = vpop.f32.mrf.mxu0
        %v301 = vadd.f32 0.0, %v300
        %v302 = vpop.f32.mrf.mxu0
        %303 = vdwg.mxu0
        %v304 = vmax.f32 %v301, 1.1754944e-38
        %306 = vset.pattern.permute.xlu0 32
        %307 = vperm.xlu0 %306, %v304
        %v308 = vpop.permute.xlu0 %307
        %v310 = vmul.f32 %v301, %v308
        %311 = vst [vmem:[%s215] sm:$0xff] %v310
        %s312 = sand.u32 %s98, 1
        %s313 = scalar_lea.sflag [#allocation4], %s312
        %s314 = sand.u32 %s98, 1
        %s315 = smul.addr %s314, 8
        %s316 = scalar_lea.vmem [#allocation7], %s315
        // Predicated region
        $region37: #{tpu_custom_call.1} parent=27 // pred_check
          %p317 = pneg %p108
        $region38: #{tpu_custom_call.1} parent=27 // pred_check_branch
          %319 = sbr.rel (%p317) target = $region40
        $region39: #{tpu_custom_call.1} parent=27 // pred_region
          %s321 = ssub.s32 128, 128
          %322 = vsyncadd %s313, %s321
          %s323 = sadd.s32 %s27, %s26
          %s324 = smul.addr %s323, 128
          %s325 = scalar_lea.hbm %s2, %s324
          %s327 = sshll.u32 %s316, 4
          %s328 = int_to_ptr.vmem [resolvable:$true] %s327
          %330 = dma.vmem_to_hbm [thread:$0]  %s328, 128, %s325, %s313
        $region40: #{tpu_custom_call.1} parent=27 // pred_fallthru
          _
      $region28: #{tpu_custom_call.1} parent=5 // pred_fallthru
        _
      %p331 = scmp.le.s32.totalorder 2, %s17
      // Predicated region
      $region41: #{tpu_custom_call.1} parent=5 // pred_check
        %p332 = pneg %p331
      $region42: #{tpu_custom_call.1} parent=5 // pred_check_branch
        %334 = sbr.rel (%p332) target = $region44
      $region43: #{tpu_custom_call.1} parent=5 // pred_region
        %s335 = ssub.s32 %s17, 2
        // Predicated region
        $region45: #{tpu_custom_call.1} parent=43 // pred_check
          %p336 = pneg %p114
        $region46: #{tpu_custom_call.1} parent=43 // pred_check_branch
          %338 = sbr.rel (%p336) target = $region48
        $region47: #{tpu_custom_call.1} parent=43 // pred_region
          %s339 = sand.u32 %s99, 1
          %s340 = scalar_lea.sflag [#allocation4], %s339
          %s341 = sand.u32 %s99, 1
          %s342 = smul.addr %s341, 8
          %s343 = scalar_lea.vmem [#allocation7], %s342
          %344 = dma.done %s340, 128
        $region48: #{tpu_custom_call.1} parent=43 // pred_fallthru
          _
      $region44: #{tpu_custom_call.1} parent=5 // pred_fallthru
        _
    $region6: #{tpu_custom_call.1} parent=1 // loop_footer
      %s21 = sadd.s32 1, %s17
    $region7: #{tpu_custom_call.1} parent=1 // loop_footer_branch
      %16 = sbr.rel target = $region3
    $region8: #{tpu_custom_call.1} parent=1 // loop_exit
      _
    %345 = vsyncpa [#allocation3], 1
    %s346 = scalar_lea.sflag [#allocation3], 1
    %347 = vsyncpa %s346, 1
    %348 = vsyncpa [#allocation6], 1
    %s349 = scalar_lea.sflag [#allocation6], 1
    %350 = vsyncpa %s349, 1
    %351 = vsyncpa [#allocation4], 1
    %s352 = scalar_lea.sflag [#allocation4], 1
    %353 = vsyncpa %s352, 1

</llo_original>
